<compile_context>
chip_gen: v7x
topology: tpu7x:2x2x1
jax: 0.10.0
libtpu: 0.0.40
codegen_flags: <defaults>
</compile_context>

<pallas_src>
import functools
import math

import jax
import jax.numpy as jnp
from jax.experimental import pallas as pl
from jax.experimental.pallas import tpu as pltpu


# Safe on all generations: < 64 MiB physical VMEM of v7x, < scoped defaults
# only by explicit request.
_VMEM_LIMIT = 32 * 1024 * 1024


def _row_tile(m):
    # Full array when small (block == array dims satisfies the (8,128) rule);
    # otherwise 256-row tiles so BlockSpec double-buffers the row stream while
    # the weight block stays resident across grid steps.
    return m if m <= 256 else 256


def _compiler_params(n_axes):
    return pltpu.CompilerParams(
        dimension_semantics=("parallel",) * n_axes,
        vmem_limit_bytes=_VMEM_LIMIT,
    )


# --------------------------------------------------------------------------
# Kernel 1: plain linear  y = x @ w + b   (w already [in, out])
# --------------------------------------------------------------------------
def _linear_kernel(x_ref, w_ref, b_ref, o_ref):
    acc = jnp.dot(x_ref[...], w_ref[...], preferred_element_type=jnp.float32)
    o_ref[...] = (acc + b_ref[...]).astype(o_ref.dtype)


def linear(x, w_t, b):
    m, k = x.shape
    k2, n = w_t.shape
    assert k == k2
    tm = _row_tile(m)
    return pl.pallas_call(
        _linear_kernel,
        out_shape=jax.ShapeDtypeStruct((m, n), x.dtype),
        grid_spec=pltpu.PrefetchScalarGridSpec(
            num_scalar_prefetch=0,
            grid=(pl.cdiv(m, tm),),
            in_specs=[
                pl.BlockSpec((tm, k), lambda i: (i, 0)),
                pl.BlockSpec((k, n), lambda i: (0, 0)),   # weight resident in VMEM
                pl.BlockSpec((1, n), lambda i: (0, 0)),   # bias resident in VMEM
            ],
            out_specs=pl.BlockSpec((tm, n), lambda i: (i, 0)),
        ),
        compiler_params=_compiler_params(1),
    )(x, w_t, b.reshape(1, n))


# --------------------------------------------------------------------------
# Kernel 2: per-head attention  softmax(scale * q @ kT) @ v
# --------------------------------------------------------------------------
def _attention_kernel(q_ref, kt_ref, v_ref, o_ref, *, scale):
    q = q_ref[0].astype(jnp.float32) * scale                       # [L, hd]
    s = jnp.dot(q, kt_ref[0].astype(jnp.float32),
                preferred_element_type=jnp.float32)                # [L, L]
    m = jnp.max(s, axis=-1, keepdims=True)
    p = jnp.exp(s - m)
    denom = jnp.sum(p, axis=-1, keepdims=True)
    p = p * pl.reciprocal(denom, approx=False)
    # TODO(synk): atten_drop (p=0.1) is train-only; eval-mode forward keeps the
    # softmax output (deterministic).
    o_ref[0] = jnp.dot(p, v_ref[0].astype(jnp.float32),
                       preferred_element_type=jnp.float32).astype(o_ref.dtype)


def attention(q_heads, kt_heads, v_heads, *, scale):
    nh, seq, hd = q_heads.shape
    return pl.pallas_call(
        functools.partial(_attention_kernel, scale=scale),
        out_shape=jax.ShapeDtypeStruct((nh, seq, hd), q_heads.dtype),
        grid_spec=pltpu.PrefetchScalarGridSpec(
            num_scalar_prefetch=0,
            grid=(nh,),                       # heads are independent
            in_specs=[
                pl.BlockSpec((1, seq, hd), lambda h: (h, 0, 0)),
                pl.BlockSpec((1, hd, seq), lambda h: (h, 0, 0)),
                pl.BlockSpec((1, seq, hd), lambda h: (h, 0, 0)),
            ],
            out_specs=pl.BlockSpec((1, seq, hd), lambda h: (h, 0, 0)),
        ),
        compiler_params=_compiler_params(1),
    )(q_heads, kt_heads, v_heads)


# --------------------------------------------------------------------------
# Kernel 3: gated residual branch  r = ab @ wl + bl ; out = r * sigmoid(r @ wr + br)
# --------------------------------------------------------------------------
def _gated_res_kernel(ab_ref, wl_ref, bl_ref, wr_ref, br_ref, o_ref):
    r = jnp.dot(ab_ref[...], wl_ref[...],
                preferred_element_type=jnp.float32) + bl_ref[...]
    g = jnp.dot(r, wr_ref[...],
                preferred_element_type=jnp.float32) + br_ref[...]
    gate = pl.reciprocal(1.0 + jnp.exp(-g), approx=False)          # exact sigmoid
    o_ref[...] = (r * gate).astype(o_ref.dtype)


def gated_res(atten_bias, wl_t, bl, wr_t, br):
    m, k = atten_bias.shape
    h = wl_t.shape[1]
    tm = _row_tile(m)
    return pl.pallas_call(
        _gated_res_kernel,
        out_shape=jax.ShapeDtypeStruct((m, h), atten_bias.dtype),
        grid_spec=pltpu.PrefetchScalarGridSpec(
            num_scalar_prefetch=0,
            grid=(pl.cdiv(m, tm),),
            in_specs=[
                pl.BlockSpec((tm, k), lambda i: (i, 0)),
                pl.BlockSpec((k, h), lambda i: (0, 0)),
                pl.BlockSpec((1, h), lambda i: (0, 0)),
                pl.BlockSpec((h, h), lambda i: (0, 0)),
                pl.BlockSpec((1, h), lambda i: (0, 0)),
            ],
            out_specs=pl.BlockSpec((tm, h), lambda i: (i, 0)),
        ),
        compiler_params=_compiler_params(1),
    )(atten_bias, wl_t, bl.reshape(1, h), wr_t, br.reshape(1, h))


# --------------------------------------------------------------------------
# Kernel 4: output projection + residual add
# --------------------------------------------------------------------------
def _out_residual_kernel(x_ref, w_ref, b_ref, r_ref, o_ref):
    y = jnp.dot(x_ref[...], w_ref[...],
                preferred_element_type=jnp.float32) + b_ref[...]
    o_ref[...] = (y + r_ref[...]).astype(o_ref.dtype)


def out_residual(x, w_t, b, res):
    m, k = x.shape
    n = w_t.shape[1]
    tm = _row_tile(m)
    return pl.pallas_call(
        _out_residual_kernel,
        out_shape=jax.ShapeDtypeStruct((m, n), x.dtype),
        grid_spec=pltpu.PrefetchScalarGridSpec(
            num_scalar_prefetch=0,
            grid=(pl.cdiv(m, tm),),
            in_specs=[
                pl.BlockSpec((tm, k), lambda i: (i, 0)),
                pl.BlockSpec((k, n), lambda i: (0, 0)),
                pl.BlockSpec((1, n), lambda i: (0, 0)),
                pl.BlockSpec((tm, n), lambda i: (i, 0)),
            ],
            out_specs=pl.BlockSpec((tm, n), lambda i: (i, 0)),
        ),
        compiler_params=_compiler_params(1),
    )(x, w_t, b.reshape(1, n), res)


# --------------------------------------------------------------------------
# Full forward (mirrors BiasedMultiHeadAtten.forward, eval mode, batch == 1)
# --------------------------------------------------------------------------
def biased_mha_forward(params, node_embedding, atten_bias, *, num_head):
    seq = node_embedding.shape[0]
    hidden = params["w_query"].shape[0]
    head_dim = hidden // num_head
    scale = head_dim ** (-0.5)

    # 1) fused Q/K projection; the reference computes `value` via self.key,
    #    so V is the K projection reused (read node_embedding once).
    w_qk = jnp.concatenate([params["w_query"].T, params["w_key"].T], axis=1)  # [4H, 2H]
    b_qk = jnp.concatenate([params["b_query"], params["b_key"]], axis=0)      # [2H]
    qk = linear(node_embedding, w_qk, b_qk)                                   # [L, 2H]
    q0, k0 = qk[:, :hidden], qk[:, hidden:]
    v0 = k0

    # 2) reproduce the reference's transpose->reshape head split exactly
    #    (wrapper-side layout plumbing; kernels see clean [nh, L, hd] tensors).
    q_heads = jnp.swapaxes(q0.T.reshape(seq, num_head, head_dim), 0, 1)       # [nh, L, hd]
    kt_heads = jnp.transpose(k0.T.reshape(seq, num_head, head_dim), (1, 2, 0))  # [nh, hd, L]
    v_heads = jnp.swapaxes(v0.T.reshape(seq, num_head, head_dim), 0, 1)       # [nh, L, hd]

    attn = attention(q_heads, kt_heads, v_heads, scale=scale)                 # [nh, L, hd]
    attn_flat = jnp.swapaxes(attn, 0, 1).reshape(seq, hidden)                 # [L, H]

    # 3) gated residual branch.
    res = gated_res(atten_bias, params["w_lin"].T, params["b_lin"],
                    params["w_res"].T, params["b_res"])                       # [L, H]

    # 4) out_proj(attn) + res, then squeeze() -> [L, H].
    return out_residual(attn_flat, params["w_out"].T, params["b_out"], res)


# --------------------------------------------------------------------------
# Plain-JAX literal transcription of the PyTorch forward (reference check)
# --------------------------------------------------------------------------
def reference_forward(params, node_embedding, atten_bias, *, num_head):
    hp = jax.lax.Precision.HIGHEST
    hidden = params["w_query"].shape[0]
    head_dim = hidden // num_head
    scale = head_dim ** (-0.5)

    def lin(x, w, b):
        return jnp.matmul(x, w.T, precision=hp) + b

    query = lin(node_embedding, params["w_query"], params["b_query"]).T
    key = lin(node_embedding, params["w_key"], params["b_key"]).T
    value = key  # the reference module calls self.key for value as well
    res = lin(atten_bias, params["w_lin"], params["b_lin"])
    res = res * jax.nn.sigmoid(lin(res, params["w_res"], params["b_res"]))[None]
    batch, seq = 1, node_embedding.shape[0]
    q = jnp.swapaxes(query.reshape(seq, batch * num_head, head_dim), 0, 1) * scale
    k = jnp.transpose(key.reshape(seq, batch * num_head, head_dim), (1, 2, 0))
    v = jnp.swapaxes(value.reshape(seq, batch * num_head, head_dim), 0, 1)
    atten = jnp.matmul(q, k, precision=hp)
    atten = jnp.swapaxes(atten, 0, 2).reshape(seq, -1, batch, num_head)
    atten = jnp.swapaxes(atten, 0, 2)
    atten = jax.nn.softmax(
        jnp.swapaxes(
            jnp.swapaxes(atten, 0, 2).reshape(seq, -1, batch * num_head), 0, 2),
        axis=2)
    atten = jnp.matmul(atten, v, precision=hp)
    atten = jnp.swapaxes(atten, 0, 1)
    out = lin(jnp.swapaxes(atten.reshape(seq, batch, hidden), 0, 1),
              params["w_out"], params["b_out"]) + res
    return jnp.squeeze(out)


if __name__ == "__main__":
    hidden_size = 32
    num_head = 4
    seq_len = 8

    key = jax.random.PRNGKey(0)
    ks = jax.random.split(key, 12)

    def xavier(k, shape, gain=1.0):
        fan_out, fan_in = shape
        limit = gain * math.sqrt(6.0 / (fan_in + fan_out))
        return jax.random.uniform(k, shape, jnp.float32, -limit, limit)

    g = 2.0 ** (-0.5)
    params = {
        # PyTorch nn.Linear layout: [out_features, in_features]
        "w_query": xavier(ks[0], (hidden_size, 4 * hidden_size), g),
        "b_query": 0.01 * jax.random.normal(ks[1], (hidden_size,), jnp.float32),
        "w_key":   xavier(ks[2], (hidden_size, 4 * hidden_size), g),
        "b_key":   0.01 * jax.random.normal(ks[3], (hidden_size,), jnp.float32),
        "w_lin":   xavier(ks[4], (hidden_size, 2 * hidden_size)),
        "b_lin":   0.01 * jax.random.normal(ks[5], (hidden_size,), jnp.float32),
        "w_res":   xavier(ks[6], (hidden_size, hidden_size), g),
        "b_res":   0.01 * jax.random.normal(ks[7], (hidden_size,), jnp.float32),
        "w_out":   xavier(ks[8], (hidden_size, hidden_size)),
        "b_out":   jnp.zeros((hidden_size,), jnp.float32),
    }

    node_embedding = jax.random.normal(ks[9], (seq_len, 4 * hidden_size), jnp.float32)
    atten_bias = jax.random.normal(ks[10], (seq_len, 2 * hidden_size), jnp.float32)

    fwd = jax.jit(functools.partial(biased_mha_forward, num_head=num_head))
    out = jax.block_until_ready(fwd(params, node_embedding, atten_bias))

    ref = reference_forward(params, node_embedding, atten_bias, num_head=num_head)
    assert out.shape == (seq_len, hidden_size), out.shape
    max_err = float(jnp.max(jnp.abs(out - ref)))
    assert jnp.allclose(out, ref, atol=1e-4, rtol=1e-4), f"max abs err = {max_err}"

    print("KERNEL_OK")
</pallas_src>

<mosaic_0001>
module attributes {stable_mosaic.version = 11 : i64} {
  func.func @_linear_kernel(%arg0: i32, %arg1: memref<8x128xf32, #tpu.memory_space<vmem>>, %arg2: memref<128x64xf32, #tpu.memory_space<vmem>>, %arg3: memref<1x64xf32, #tpu.memory_space<vmem>>, %arg4: memref<8x64xf32, #tpu.memory_space<vmem>>) attributes {dimension_semantics = [#tpu.dimension_semantics<parallel>], iteration_bounds = array<i64: 1>, scalar_prefetch = 0 : i64, scratch_operands = 0 : i64, tpu.core_type = #tpu.core_type<tc>, window_params = [{transform_indices = @transform_0, window_bounds = array<i64: 8, 128>}, {pipeline_mode = #tpu.pipeline_mode<synchronous>, transform_indices = @transform_1, window_bounds = array<i64: 128, 64>}, {pipeline_mode = #tpu.pipeline_mode<synchronous>, transform_indices = @transform_2, window_bounds = array<i64: 1, 64>}, {transform_indices = @transform_3, window_bounds = array<i64: 8, 64>}]} {
    %c0 = arith.constant 0 : index
    %c0_0 = arith.constant 0 : index
    %0 = vector.load %arg1[%c0, %c0_0] : memref<8x128xf32, #tpu.memory_space<vmem>>, vector<8x128xf32>
    %c0_1 = arith.constant 0 : index
    %c0_2 = arith.constant 0 : index
    %1 = vector.load %arg2[%c0_1, %c0_2] : memref<128x64xf32, #tpu.memory_space<vmem>>, vector<128x64xf32>
    %cst = arith.constant dense<0.000000e+00> : vector<8x64xf32>
    %2 = tpu.matmul %0, %1, %cst {dimension_numbers = #tpu.dot_dimension_numbers<[1], [0], [0], [1], [0, 0, 1, 1], [], []>} : vector<8x128xf32>, vector<128x64xf32>, vector<8x64xf32> -> vector<8x64xf32>
    %c0_3 = arith.constant 0 : index
    %c0_4 = arith.constant 0 : index
    %3 = vector.load %arg3[%c0_3, %c0_4] : memref<1x64xf32, #tpu.memory_space<vmem>>, vector<1x64xf32>
    %4 = vector.broadcast %3 : vector<1x64xf32> to vector<8x64xf32>
    %5 = arith.addf %2, %4 : vector<8x64xf32>
    %c0_5 = arith.constant 0 : index
    %c0_6 = arith.constant 0 : index
    %6 = vector.load %arg4[%c0_5, %c0_6] : memref<8x64xf32, #tpu.memory_space<vmem>>, vector<8x64xf32>
    tpu.vector_store %arg4[%c0_5, %c0_6], %5 {strides = array<i32>} : memref<8x64xf32, #tpu.memory_space<vmem>>, vector<8x64xf32>,
    return
  }
  func.func @transform_0(%arg0: i32) -> (i32, i32) {
    %c0_i32 = arith.constant 0 : i32
    %c0_i32_0 = arith.constant 0 : i32
    return %arg0, %c0_i32 : i32, i32
  }
  func.func @transform_1(%arg0: i32) -> (i32, i32) {
    %c0_i32 = arith.constant 0 : i32
    %c0_i32_0 = arith.constant 0 : i32
    %c0_i32_1 = arith.constant 0 : i32
    return %c0_i32, %c0_i32_0 : i32, i32
  }
  func.func @transform_2(%arg0: i32) -> (i32, i32) {
    %c0_i32 = arith.constant 0 : i32
    %c0_i32_0 = arith.constant 0 : i32
    %c0_i32_1 = arith.constant 0 : i32
    return %c0_i32, %c0_i32_0 : i32, i32
  }
  func.func @transform_3(%arg0: i32) -> (i32, i32) {
    %c0_i32 = arith.constant 0 : i32
    %c0_i32_0 = arith.constant 0 : i32
    return %arg0, %c0_i32 : i32, i32
  }
}

module attributes {stable_mosaic.version = 11 : i64} {
  func.func @_attention_kernel(%arg0: i32, %arg1: memref<1x8x8xf32, #tpu.memory_space<vmem>>, %arg2: memref<1x8x8xf32, #tpu.memory_space<vmem>>, %arg3: memref<1x8x8xf32, #tpu.memory_space<vmem>>, %arg4: memref<1x8x8xf32, #tpu.memory_space<vmem>>) attributes {dimension_semantics = [#tpu.dimension_semantics<parallel>], iteration_bounds = array<i64: 4>, scalar_prefetch = 0 : i64, scratch_operands = 0 : i64, tpu.core_type = #tpu.core_type<tc>, window_params = [{transform_indices = @transform_0, window_bounds = array<i64: 1, 8, 8>}, {transform_indices = @transform_1, window_bounds = array<i64: 1, 8, 8>}, {transform_indices = @transform_2, window_bounds = array<i64: 1, 8, 8>}, {transform_indices = @transform_3, window_bounds = array<i64: 1, 8, 8>}]} {
    %c0 = arith.constant 0 : index
    %c0_0 = arith.constant 0 : index
    %c0_1 = arith.constant 0 : index
    %0 = vector.load %arg1[%c0, %c0_0, %c0_1] : memref<1x8x8xf32, #tpu.memory_space<vmem>>, vector<1x8x8xf32>
    %1 = vector.shape_cast %0 : vector<1x8x8xf32> to vector<8x8xf32>
    %cst = arith.constant 0.353553385 : f32
    %2 = vector.broadcast %cst : f32 to vector<8x8xf32>
    %3 = arith.mulf %1, %2 : vector<8x8xf32>
    %c0_2 = arith.constant 0 : index
    %c0_3 = arith.constant 0 : index
    %c0_4 = arith.constant 0 : index
    %4 = vector.load %arg2[%c0_2, %c0_3, %c0_4] : memref<1x8x8xf32, #tpu.memory_space<vmem>>, vector<1x8x8xf32>
    %5 = vector.shape_cast %4 : vector<1x8x8xf32> to vector<8x8xf32>
    %cst_5 = arith.constant dense<0.000000e+00> : vector<8x8xf32>
    %6 = tpu.matmul %3, %5, %cst_5 {dimension_numbers = #tpu.dot_dimension_numbers<[1], [0], [0], [1], [0, 0, 1, 1], [], []>} : vector<8x8xf32>, vector<8x8xf32>, vector<8x8xf32> -> vector<8x8xf32>
    %cst_6 = arith.constant dense<0xFF800000> : vector<8xf32>
    %7 = vector.multi_reduction <maximumf>, %6, %cst_6 [1] : vector<8x8xf32> to vector<8xf32>
    %8 = vector.shape_cast %7 : vector<8xf32> to vector<8x1xf32>
    %9 = vector.broadcast %8 : vector<8x1xf32> to vector<8x8xf32>
    %10 = arith.subf %6, %9 : vector<8x8xf32>
    %11 = math.exp %10 : vector<8x8xf32>
    %cst_7 = arith.constant dense<0.000000e+00> : vector<8xf32>
    %12 = vector.multi_reduction <add>, %11, %cst_7 [1] : vector<8x8xf32> to vector<8xf32>
    %13 = vector.shape_cast %12 : vector<8xf32> to vector<8x1xf32>
    %14 = tpu.reciprocal %13 : vector<8x1xf32> -> vector<8x1xf32>
    %15 = vector.broadcast %14 : vector<8x1xf32> to vector<8x8xf32>
    %16 = arith.mulf %11, %15 : vector<8x8xf32>
    %c0_8 = arith.constant 0 : index
    %c0_9 = arith.constant 0 : index
    %c0_10 = arith.constant 0 : index
    %17 = vector.load %arg3[%c0_8, %c0_9, %c0_10] : memref<1x8x8xf32, #tpu.memory_space<vmem>>, vector<1x8x8xf32>
    %18 = vector.shape_cast %17 : vector<1x8x8xf32> to vector<8x8xf32>
    %cst_11 = arith.constant dense<0.000000e+00> : vector<8x8xf32>
    %19 = tpu.matmul %16, %18, %cst_11 {dimension_numbers = #tpu.dot_dimension_numbers<[1], [0], [0], [1], [0, 0, 1, 1], [], []>} : vector<8x8xf32>, vector<8x8xf32>, vector<8x8xf32> -> vector<8x8xf32>
    %c0_12 = arith.constant 0 : index
    %c0_13 = arith.constant 0 : index
    %c0_14 = arith.constant 0 : index
    %20 = vector.load %arg4[%c0_12, %c0_13, %c0_14] : memref<1x8x8xf32, #tpu.memory_space<vmem>>, vector<1x8x8xf32>
    %21 = vector.shape_cast %20 : vector<1x8x8xf32> to vector<8x8xf32>
    %22 = vector.shape_cast %19 : vector<8x8xf32> to vector<1x8x8xf32>
    tpu.vector_store %arg4[%c0_12, %c0_13, %c0_14], %22 {strides = array<i32>} : memref<1x8x8xf32, #tpu.memory_space<vmem>>, vector<1x8x8xf32>,
    return
  }
  func.func @transform_0(%arg0: i32) -> (i32, i32, i32) {
    %c0_i32 = arith.constant 0 : i32
    %c0_i32_0 = arith.constant 0 : i32
    %c0_i32_1 = arith.constant 0 : i32
    return %arg0, %c0_i32, %c0_i32_0 : i32, i32, i32
  }
  func.func @transform_1(%arg0: i32) -> (i32, i32, i32) {
    %c0_i32 = arith.constant 0 : i32
    %c0_i32_0 = arith.constant 0 : i32
    %c0_i32_1 = arith.constant 0 : i32
    return %arg0, %c0_i32, %c0_i32_0 : i32, i32, i32
  }
  func.func @transform_2(%arg0: i32) -> (i32, i32, i32) {
    %c0_i32 = arith.constant 0 : i32
    %c0_i32_0 = arith.constant 0 : i32
    %c0_i32_1 = arith.constant 0 : i32
    return %arg0, %c0_i32, %c0_i32_0 : i32, i32, i32
  }
  func.func @transform_3(%arg0: i32) -> (i32, i32, i32) {
    %c0_i32 = arith.constant 0 : i32
    %c0_i32_0 = arith.constant 0 : i32
    %c0_i32_1 = arith.constant 0 : i32
    return %arg0, %c0_i32, %c0_i32_0 : i32, i32, i32
  }
}

module attributes {stable_mosaic.version = 11 : i64} {
  func.func @_gated_res_kernel(%arg0: i32, %arg1: memref<8x64xf32, #tpu.memory_space<vmem>>, %arg2: memref<64x32xf32, #tpu.memory_space<vmem>>, %arg3: memref<1x32xf32, #tpu.memory_space<vmem>>, %arg4: memref<32x32xf32, #tpu.memory_space<vmem>>, %arg5: memref<1x32xf32, #tpu.memory_space<vmem>>, %arg6: memref<8x32xf32, #tpu.memory_space<vmem>>) attributes {dimension_semantics = [#tpu.dimension_semantics<parallel>], iteration_bounds = array<i64: 1>, scalar_prefetch = 0 : i64, scratch_operands = 0 : i64, tpu.core_type = #tpu.core_type<tc>, window_params = [{transform_indices = @transform_0, window_bounds = array<i64: 8, 64>}, {pipeline_mode = #tpu.pipeline_mode<synchronous>, transform_indices = @transform_1, window_bounds = array<i64: 64, 32>}, {pipeline_mode = #tpu.pipeline_mode<synchronous>, transform_indices = @transform_2, window_bounds = array<i64: 1, 32>}, {pipeline_mode = #tpu.pipeline_mode<synchronous>, transform_indices = @transform_3, window_bounds = array<i64: 32, 32>}, {pipeline_mode = #tpu.pipeline_mode<synchronous>, transform_indices = @transform_4, window_bounds = array<i64: 1, 32>}, {transform_indices = @transform_5, window_bounds = array<i64: 8, 32>}]} {
    %c0 = arith.constant 0 : index
    %c0_0 = arith.constant 0 : index
    %0 = vector.load %arg1[%c0, %c0_0] : memref<8x64xf32, #tpu.memory_space<vmem>>, vector<8x64xf32>
    %c0_1 = arith.constant 0 : index
    %c0_2 = arith.constant 0 : index
    %1 = vector.load %arg2[%c0_1, %c0_2] : memref<64x32xf32, #tpu.memory_space<vmem>>, vector<64x32xf32>
    %cst = arith.constant dense<0.000000e+00> : vector<8x32xf32>
    %2 = tpu.matmul %0, %1, %cst {dimension_numbers = #tpu.dot_dimension_numbers<[1], [0], [0], [1], [0, 0, 1, 1], [], []>} : vector<8x64xf32>, vector<64x32xf32>, vector<8x32xf32> -> vector<8x32xf32>
    %c0_3 = arith.constant 0 : index
    %c0_4 = arith.constant 0 : index
    %3 = vector.load %arg3[%c0_3, %c0_4] : memref<1x32xf32, #tpu.memory_space<vmem>>, vector<1x32xf32>
    %4 = vector.broadcast %3 : vector<1x32xf32> to vector<8x32xf32>
    %5 = arith.addf %2, %4 : vector<8x32xf32>
    %c0_5 = arith.constant 0 : index
    %c0_6 = arith.constant 0 : index
    %6 = vector.load %arg4[%c0_5, %c0_6] : memref<32x32xf32, #tpu.memory_space<vmem>>, vector<32x32xf32>
    %cst_7 = arith.constant dense<0.000000e+00> : vector<8x32xf32>
    %7 = tpu.matmul %5, %6, %cst_7 {dimension_numbers = #tpu.dot_dimension_numbers<[1], [0], [0], [1], [0, 0, 1, 1], [], []>} : vector<8x32xf32>, vector<32x32xf32>, vector<8x32xf32> -> vector<8x32xf32>
    %c0_8 = arith.constant 0 : index
    %c0_9 = arith.constant 0 : index
    %8 = vector.load %arg5[%c0_8, %c0_9] : memref<1x32xf32, #tpu.memory_space<vmem>>, vector<1x32xf32>
    %9 = vector.broadcast %8 : vector<1x32xf32> to vector<8x32xf32>
    %10 = arith.addf %7, %9 : vector<8x32xf32>
    %cst_10 = arith.constant 0.000000e+00 : f32
    %11 = vector.broadcast %cst_10 : f32 to vector<8x32xf32>
    %12 = arith.subf %11, %10 : vector<8x32xf32>
    %13 = math.exp %12 : vector<8x32xf32>
    %cst_11 = arith.constant 1.000000e+00 : f32
    %14 = vector.broadcast %cst_11 : f32 to vector<8x32xf32>
    %15 = arith.addf %14, %13 : vector<8x32xf32>
    %16 = tpu.reciprocal %15 : vector<8x32xf32> -> vector<8x32xf32>
    %17 = arith.mulf %5, %16 : vector<8x32xf32>
    %c0_12 = arith.constant 0 : index
    %c0_13 = arith.constant 0 : index
    %18 = vector.load %arg6[%c0_12, %c0_13] : memref<8x32xf32, #tpu.memory_space<vmem>>, vector<8x32xf32>
    tpu.vector_store %arg6[%c0_12, %c0_13], %17 {strides = array<i32>} : memref<8x32xf32, #tpu.memory_space<vmem>>, vector<8x32xf32>,
    return
  }
  func.func @transform_0(%arg0: i32) -> (i32, i32) {
    %c0_i32 = arith.constant 0 : i32
    %c0_i32_0 = arith.constant 0 : i32
    return %arg0, %c0_i32 : i32, i32
  }
  func.func @transform_1(%arg0: i32) -> (i32, i32) {
    %c0_i32 = arith.constant 0 : i32
    %c0_i32_0 = arith.constant 0 : i32
    %c0_i32_1 = arith.constant 0 : i32
    return %c0_i32, %c0_i32_0 : i32, i32
  }
  func.func @transform_2(%arg0: i32) -> (i32, i32) {
    %c0_i32 = arith.constant 0 : i32
    %c0_i32_0 = arith.constant 0 : i32
    %c0_i32_1 = arith.constant 0 : i32
    return %c0_i32, %c0_i32_0 : i32, i32
  }
  func.func @transform_3(%arg0: i32) -> (i32, i32) {
    %c0_i32 = arith.constant 0 : i32
    %c0_i32_0 = arith.constant 0 : i32
    %c0_i32_1 = arith.constant 0 : i32
    return %c0_i32, %c0_i32_0 : i32, i32
  }
  func.func @transform_4(%arg0: i32) -> (i32, i32) {
    %c0_i32 = arith.constant 0 : i32
    %c0_i32_0 = arith.constant 0 : i32
    %c0_i32_1 = arith.constant 0 : i32
    return %c0_i32, %c0_i32_0 : i32, i32
  }
  func.func @transform_5(%arg0: i32) -> (i32, i32) {
    %c0_i32 = arith.constant 0 : i32
    %c0_i32_0 = arith.constant 0 : i32
    return %arg0, %c0_i32 : i32, i32
  }
}

module attributes {stable_mosaic.version = 11 : i64} {
  func.func @_out_residual_kernel(%arg0: i32, %arg1: memref<8x32xf32, #tpu.memory_space<vmem>>, %arg2: memref<32x32xf32, #tpu.memory_space<vmem>>, %arg3: memref<1x32xf32, #tpu.memory_space<vmem>>, %arg4: memref<8x32xf32, #tpu.memory_space<vmem>>, %arg5: memref<8x32xf32, #tpu.memory_space<vmem>>) attributes {dimension_semantics = [#tpu.dimension_semantics<parallel>], iteration_bounds = array<i64: 1>, scalar_prefetch = 0 : i64, scratch_operands = 0 : i64, tpu.core_type = #tpu.core_type<tc>, window_params = [{transform_indices = @transform_0, window_bounds = array<i64: 8, 32>}, {pipeline_mode = #tpu.pipeline_mode<synchronous>, transform_indices = @transform_1, window_bounds = array<i64: 32, 32>}, {pipeline_mode = #tpu.pipeline_mode<synchronous>, transform_indices = @transform_2, window_bounds = array<i64: 1, 32>}, {transform_indices = @transform_3, window_bounds = array<i64: 8, 32>}, {transform_indices = @transform_4, window_bounds = array<i64: 8, 32>}]} {
    %c0 = arith.constant 0 : index
    %c0_0 = arith.constant 0 : index
    %0 = vector.load %arg1[%c0, %c0_0] : memref<8x32xf32, #tpu.memory_space<vmem>>, vector<8x32xf32>
    %c0_1 = arith.constant 0 : index
    %c0_2 = arith.constant 0 : index
    %1 = vector.load %arg2[%c0_1, %c0_2] : memref<32x32xf32, #tpu.memory_space<vmem>>, vector<32x32xf32>
    %cst = arith.constant dense<0.000000e+00> : vector<8x32xf32>
    %2 = tpu.matmul %0, %1, %cst {dimension_numbers = #tpu.dot_dimension_numbers<[1], [0], [0], [1], [0, 0, 1, 1], [], []>} : vector<8x32xf32>, vector<32x32xf32>, vector<8x32xf32> -> vector<8x32xf32>
    %c0_3 = arith.constant 0 : index
    %c0_4 = arith.constant 0 : index
    %3 = vector.load %arg3[%c0_3, %c0_4] : memref<1x32xf32, #tpu.memory_space<vmem>>, vector<1x32xf32>
    %4 = vector.broadcast %3 : vector<1x32xf32> to vector<8x32xf32>
    %5 = arith.addf %2, %4 : vector<8x32xf32>
    %c0_5 = arith.constant 0 : index
    %c0_6 = arith.constant 0 : index
    %6 = vector.load %arg4[%c0_5, %c0_6] : memref<8x32xf32, #tpu.memory_space<vmem>>, vector<8x32xf32>
    %7 = arith.addf %5, %6 : vector<8x32xf32>
    %c0_7 = arith.constant 0 : index
    %c0_8 = arith.constant 0 : index
    %8 = vector.load %arg5[%c0_7, %c0_8] : memref<8x32xf32, #tpu.memory_space<vmem>>, vector<8x32xf32>
    tpu.vector_store %arg5[%c0_7, %c0_8], %7 {strides = array<i32>} : memref<8x32xf32, #tpu.memory_space<vmem>>, vector<8x32xf32>,
    return
  }
  func.func @transform_0(%arg0: i32) -> (i32, i32) {
    %c0_i32 = arith.constant 0 : i32
    %c0_i32_0 = arith.constant 0 : i32
    return %arg0, %c0_i32 : i32, i32
  }
  func.func @transform_1(%arg0: i32) -> (i32, i32) {
    %c0_i32 = arith.constant 0 : i32
    %c0_i32_0 = arith.constant 0 : i32
    %c0_i32_1 = arith.constant 0 : i32
    return %c0_i32, %c0_i32_0 : i32, i32
  }
  func.func @transform_2(%arg0: i32) -> (i32, i32) {
    %c0_i32 = arith.constant 0 : i32
    %c0_i32_0 = arith.constant 0 : i32
    %c0_i32_1 = arith.constant 0 : i32
    return %c0_i32, %c0_i32_0 : i32, i32
  }
  func.func @transform_3(%arg0: i32) -> (i32, i32) {
    %c0_i32 = arith.constant 0 : i32
    %c0_i32_0 = arith.constant 0 : i32
    return %arg0, %c0_i32 : i32, i32
  }
  func.func @transform_4(%arg0: i32) -> (i32, i32) {
    %c0_i32 = arith.constant 0 : i32
    %c0_i32_0 = arith.constant 0 : i32
    return %arg0, %c0_i32 : i32, i32
  }
}

</mosaic_0001>

<llo_original>
// kernel: biased_mha_forward.4
$region0: #{biased_mha_forward.4}
  #allocation0 [shape = 'u32[]', space=smem, size = 0x4, offset = 0x4, fixed_abs, tag = 'smem constant byte address 0x4 - core index']
  #allocation1 [shape = 'u32[144,128]{1,0:T(1,128)}', space=vmem, size = 0x12000, scoped, tag = 'internal scratch']
  %s0 = inlined_call_operand.vmem [shape: f32[8,128], index: 0, kind: input, shape index: {}]
  %s1 = inlined_call_operand.vmem [shape: f32[128,64], index: 1, kind: input, shape index: {}]
  %s2 = inlined_call_operand.vmem [shape: f32[1,64], index: 2, kind: input, shape index: {}]
  %s3 = inlined_call_operand.vmem [shape: f32[8,64], index: 3, kind: output, shape index: {}]
  %s4 = sld [smem:[#allocation0]]
  $region22: #{biased_mha_forward.4} parent=0
    _
  %s6 = ssub.s32 1, %s4
  %s7 = scalar_select 0, %s6, %s4
  // Predicated region
  $region2: #{biased_mha_forward.4} parent=0 // pred_check
    _
  $region3: #{biased_mha_forward.4} parent=0 // pred_check_branch
    %9 = sbr.rel (0) target = $region5
  $region4: #{biased_mha_forward.4} parent=0 // pred_region
    _
  $region5: #{biased_mha_forward.4} parent=0 // pred_fallthru
    _
  // Predicated region
  $region6: #{biased_mha_forward.4} parent=0 // pred_check
    _
  $region7: #{biased_mha_forward.4} parent=0 // pred_check_branch
    %11 = sbr.rel (0) target = $region9
  $region8: #{biased_mha_forward.4} parent=0 // pred_region
    _
  $region9: #{biased_mha_forward.4} parent=0 // pred_fallthru
    _
  // Predicated region
  $region10: #{biased_mha_forward.4} parent=0 // pred_check
    _
  $region11: #{biased_mha_forward.4} parent=0 // pred_check_branch
    %13 = sbr.rel (0) target = $region13
  $region12: #{biased_mha_forward.4} parent=0 // pred_region
    _
  $region13: #{biased_mha_forward.4} parent=0 // pred_fallthru
    _
  %v14 = vld [vmem:[%s0] sm:$0xff]
  %v15 = vld [vmem:[%s1] sm:$0xff]
  %v16 = vld [vmem:[%s1 + $0x8] sm:$0xff]
  %v17 = vld [vmem:[%s1 + $0x10] sm:$0xff]
  %v18 = vld [vmem:[%s1 + $0x18] sm:$0xff]
  %v19 = vld [vmem:[%s1 + $0x20] sm:$0xff]
  %v20 = vld [vmem:[%s1 + $0x28] sm:$0xff]
  %v21 = vld [vmem:[%s1 + $0x30] sm:$0xff]
  %v22 = vld [vmem:[%s1 + $0x38] sm:$0xff]
  %v23 = vld [vmem:[%s1 + $0x40] sm:$0xff]
  %v24 = vld [vmem:[%s1 + $0x48] sm:$0xff]
  %v25 = vld [vmem:[%s1 + $0x50] sm:$0xff]
  %v26 = vld [vmem:[%s1 + $0x58] sm:$0xff]
  %v27 = vld [vmem:[%s1 + $0x60] sm:$0xff]
  %v28 = vld [vmem:[%s1 + $0x68] sm:$0xff]
  %v29 = vld [vmem:[%s1 + $0x70] sm:$0xff]
  %v30 = vld [vmem:[%s1 + $0x78] sm:$0xff]
  %v31 = vld [vmem:[%s2] sm:$0x1]
  %v33 = vlaneseq
  %v34 = vshrl.u32 %v33, 7
  %v35 = vsub.s32 0, %v34
  %v36 = vrot.slane %v31, %v35
  %38 = vmatprep.subr.mxu0 0.0
  %39 = vmatpush1.msra.mxu0 %v15
  %40 = vmatprep.subr.mxu0 0.0
  %41 = vmatpush1.msra.mxu0 %v16
  %42 = vmatprep.subr.mxu0 0.0
  %43 = vmatpush1.msra.mxu0 %v17
  %44 = vmatprep.subr.mxu0 0.0
  %45 = vmatpush1.msra.mxu0 %v18
  %46 = vmatprep.subr.mxu0 0.0
  %47 = vmatpush1.msra.mxu0 %v19
  %48 = vmatprep.subr.mxu0 0.0
  %49 = vmatpush1.msra.mxu0 %v20
  %50 = vmatprep.subr.mxu0 0.0
  %51 = vmatpush1.msra.mxu0 %v21
  %52 = vmatprep.subr.mxu0 0.0
  %53 = vmatpush1.msra.mxu0 %v22
  %54 = vmatprep.subr.mxu0 0.0
  %55 = vmatpush1.msra.mxu0 %v23
  %56 = vmatprep.subr.mxu0 0.0
  %57 = vmatpush1.msra.mxu0 %v24
  %58 = vmatprep.subr.mxu0 0.0
  %59 = vmatpush1.msra.mxu0 %v25
  %60 = vmatprep.subr.mxu0 0.0
  %61 = vmatpush1.msra.mxu0 %v26
  %62 = vmatprep.subr.mxu0 0.0
  %63 = vmatpush1.msra.mxu0 %v27
  %64 = vmatprep.subr.mxu0 0.0
  %65 = vmatpush1.msra.mxu0 %v28
  %66 = vmatprep.subr.mxu0 0.0
  %67 = vmatpush1.msra.mxu0 %v29
  %68 = vmatprep.subr.mxu0 0.0
  %69 = vmatpush1.msra.mxu0 %v30
  %70 = vmatprep.subr.mxu0 0.0
  %71 = vmatpush1.msra.mxu0 0.0
  %72 = vmatprep.subr.mxu0 0.0
  %73 = vmatpush1.msra.mxu0 0.0
  %74 = vmatprep.subr.mxu0 0.0
  %75 = vmatpush1.msra.mxu0 0.0
  %76 = vmatprep.subr.mxu0 0.0
  %77 = vmatpush1.msra.mxu0 0.0
  %78 = vmatprep.subr.mxu0 0.0
  %79 = vmatpush1.msra.mxu0 0.0
  %80 = vmatprep.subr.mxu0 0.0
  %81 = vmatpush1.msra.mxu0 0.0
  %82 = vmatprep.subr.mxu0 0.0
  %83 = vmatpush1.msra.mxu0 0.0
  %84 = vmatprep.subr.mxu0 0.0
  %85 = vmatpush1.msra.mxu0 0.0
  %86 = vmatprep.subr.mxu0 0.0
  %87 = vmatpush1.msra.mxu0 0.0
  %88 = vmatprep.subr.mxu0 0.0
  %89 = vmatpush1.msra.mxu0 0.0
  %90 = vmatprep.subr.mxu0 0.0
  %91 = vmatpush1.msra.mxu0 0.0
  %92 = vmatprep.subr.mxu0 0.0
  %93 = vmatpush1.msra.mxu0 0.0
  %94 = vmatprep.subr.mxu0 0.0
  %95 = vmatpush1.msra.mxu0 0.0
  %96 = vmatprep.subr.mxu0 0.0
  %97 = vmatpush1.msra.mxu0 0.0
  %98 = vmatprep.subr.mxu0 0.0
  %99 = vmatpush1.msra.mxu0 0.0
  %100 = vmatprep.subr.mxu0 0.0
  %101 = vmatpush1.msra.mxu0 0.0
  %102 = vmatprep.mubr.f32.mxu0 0.0
  %103 = vmatmul.mubr.f32.gmra.mrb[0].mxu0 %v14
  %v104 = vpop.f32.mrb[0].mxu0
  %v105 = vadd.f32 %v36, %v104
  %v106 = vpop.f32.mrb[0].mxu0
  %107 = vdwg.mxu0
  %vm108 = vcmask 523264
  %109 = vst.msk [vmem:[%s3] sm:$0xff] %vm108, %v105
  // Predicated region
  $region14: #{biased_mha_forward.4} parent=0 // pred_check
    _
  $region15: #{biased_mha_forward.4} parent=0 // pred_check_branch
    %111 = sbr.rel (0) target = $region17
  $region16: #{biased_mha_forward.4} parent=0 // pred_region
    _
  $region17: #{biased_mha_forward.4} parent=0 // pred_fallthru
    _
  // Predicated region
  $region18: #{biased_mha_forward.4} parent=0 // pred_check
    _
  $region19: #{biased_mha_forward.4} parent=0 // pred_check_branch
    %113 = sbr.rel (0) target = $region21
  $region20: #{biased_mha_forward.4} parent=0 // pred_region
    _
  $region21: #{biased_mha_forward.4} parent=0 // pred_fallthru
    _

// kernel: biased_mha_forward.5
$region0: #{biased_mha_forward.5}
  #allocation0 [shape = 'u32[]', space=smem, size = 0x4, offset = 0x4, fixed_abs, tag = 'smem constant byte address 0x4 - core index']
  #allocation1 [shape = 'u32[144,128]{1,0:T(1,128)}', space=vmem, size = 0x12000, scoped, tag = 'internal scratch']
  %s0 = inlined_call_operand.vmem [shape: f32[4,8,8], index: 0, kind: input, shape index: {}]
  %s1 = inlined_call_operand.vmem [shape: f32[4,8,8], index: 1, kind: input, shape index: {}]
  %s2 = inlined_call_operand.vmem [shape: f32[4,8,8], index: 2, kind: input, shape index: {}]
  %s3 = inlined_call_operand.vmem [shape: f32[4,8,8], index: 3, kind: output, shape index: {}]
  %s4 = sld [smem:[#allocation0]]
  $region45: #{biased_mha_forward.5} parent=0
    _
  %s6 = ssub.s32 1, %s4
  %s7 = scalar_select 0, %s6, %s4
  loop: start=0, step=1, limit=6
  $region2: #{biased_mha_forward.5} parent=0 // loop_pre_header
    _
  $region3: #{biased_mha_forward.5} parent=0 // loop_header
    %s9 = sphi 0, %s13
    %p10 = scmp.ge.s32.totalorder %s9, 6
    %s19 = sphi 0, %s21
    %s22 = sphi 0, %s19
    %s23 = sphi 0, %s22
    %s39 = sphi 0, %s23
    %s45 = sphi 0, %s47
    %s48 = sphi 0, %s45
    %s49 = sphi 0, %s48
    %s65 = sphi 0, %s49
    %s71 = sphi 0, %s73
    %s74 = sphi 0, %s71
    %s75 = sphi 0, %s74
    %s91 = sphi 0, %s75
    %s97 = sphi 0, %s99
    %s100 = sphi 0, %s97
    %s101 = sphi 0, %s100
    %s117 = sphi 0, %s101
  $region4: #{biased_mha_forward.5} parent=0 // loop_header_branch
    %12 = sbr.rel (%p10) target = $region8
  $region5: #{biased_mha_forward.5} parent=0 // loop_body
    %s14 = ssub.s32 %s9, 1
    %s15 = ssub.s32 %s9, 2
    %s16 = sadd.s32 %s9, 1
    %s17 = ssub.s32 %s9, %s16
    %p18 = scmp.eq.s32.totalorder %s17, 0
    %s20 = sadd.s32 %s19, 1
    %s21 = scalar_select %p18, %s19, %s20
    %p24 = pneg %p18
    %p25 = scmp.eq.s32.totalorder %s9, 3
    %p26 = por %p24, %p25
    %p27 = scmp.ne.s32.totalorder %s19, %s22
    %p28 = scmp.eq.s32.totalorder %s9, 0
    %p29 = por %p27, %p28
    %p30 = scmp.ne.s32.totalorder %s19, %s22
    %p31 = scmp.eq.s32.totalorder %s14, 3
    %p32 = por %p30, %p31
    %p33 = scmp.ne.s32.totalorder %s22, %s23
    %p34 = scmp.eq.s32.totalorder %s14, 0
    %p35 = por %p33, %p34
    %p36 = scmp.ne.s32.totalorder %s22, %s23
    %p37 = scmp.eq.s32.totalorder %s15, 3
    %p38 = por %p36, %p37
    %p40 = scmp.ne.s32.totalorder %s23, %s39
    %p41 = scmp.eq.s32.totalorder %s15, 0
    %p42 = por %p40, %p41
    %s43 = ssub.s32 %s9, %s16
    %p44 = scmp.eq.s32.totalorder %s43, 0
    %s46 = sadd.s32 %s45, 1
    %s47 = scalar_select %p44, %s45, %s46
    %p50 = pneg %p44
    %p51 = scmp.eq.s32.totalorder %s9, 3
    %p52 = por %p50, %p51
    %p53 = scmp.ne.s32.totalorder %s45, %s48
    %p54 = scmp.eq.s32.totalorder %s9, 0
    %p55 = por %p53, %p54
    %p56 = scmp.ne.s32.totalorder %s45, %s48
    %p57 = scmp.eq.s32.totalorder %s14, 3
    %p58 = por %p56, %p57
    %p59 = scmp.ne.s32.totalorder %s48, %s49
    %p60 = scmp.eq.s32.totalorder %s14, 0
    %p61 = por %p59, %p60
    %p62 = scmp.ne.s32.totalorder %s48, %s49
    %p63 = scmp.eq.s32.totalorder %s15, 3
    %p64 = por %p62, %p63
    %p66 = scmp.ne.s32.totalorder %s49, %s65
    %p67 = scmp.eq.s32.totalorder %s15, 0
    %p68 = por %p66, %p67
    %s69 = ssub.s32 %s9, %s16
    %p70 = scmp.eq.s32.totalorder %s69, 0
    %s72 = sadd.s32 %s71, 1
    %s73 = scalar_select %p70, %s71, %s72
    %p76 = pneg %p70
    %p77 = scmp.eq.s32.totalorder %s9, 3
    %p78 = por %p76, %p77
    %p79 = scmp.ne.s32.totalorder %s71, %s74
    %p80 = scmp.eq.s32.totalorder %s9, 0
    %p81 = por %p79, %p80
    %p82 = scmp.ne.s32.totalorder %s71, %s74
    %p83 = scmp.eq.s32.totalorder %s14, 3
    %p84 = por %p82, %p83
    %p85 = scmp.ne.s32.totalorder %s74, %s75
    %p86 = scmp.eq.s32.totalorder %s14, 0
    %p87 = por %p85, %p86
    %p88 = scmp.ne.s32.totalorder %s74, %s75
    %p89 = scmp.eq.s32.totalorder %s15, 3
    %p90 = por %p88, %p89
    %p92 = scmp.ne.s32.totalorder %s75, %s91
    %p93 = scmp.eq.s32.totalorder %s15, 0
    %p94 = por %p92, %p93
    %s95 = ssub.s32 %s9, %s16
    %p96 = scmp.eq.s32.totalorder %s95, 0
    %s98 = sadd.s32 %s97, 1
    %s99 = scalar_select %p96, %s97, %s98
    %p102 = pneg %p96
    %p103 = scmp.eq.s32.totalorder %s9, 3
    %p104 = por %p102, %p103
    %p105 = scmp.ne.s32.totalorder %s97, %s100
    %p106 = scmp.eq.s32.totalorder %s9, 0
    %p107 = por %p105, %p106
    %p108 = scmp.ne.s32.totalorder %s97, %s100
    %p109 = scmp.eq.s32.totalorder %s14, 3
    %p110 = por %p108, %p109
    %p111 = scmp.ne.s32.totalorder %s100, %s101
    %p112 = scmp.eq.s32.totalorder %s14, 0
    %p113 = por %p111, %p112
    %p114 = scmp.ne.s32.totalorder %s100, %s101
    %p115 = scmp.eq.s32.totalorder %s15, 3
    %p116 = por %p114, %p115
    %p118 = scmp.ne.s32.totalorder %s101, %s117
    %p119 = scmp.eq.s32.totalorder %s15, 0
    %p120 = por %p118, %p119
    %p121 = scmp.le.s32.totalorder 1, %s9
    %p122 = scmp.lt.s32.totalorder %s9, 5
    %p123 = pnand %p121, %p122
    %p124 = pneg %p123
    // Predicated region
    $region9: #{biased_mha_forward.5} parent=5 // pred_check
      _
    $region10: #{biased_mha_forward.5} parent=5 // pred_check_branch
      %126 = sbr.rel (%p123) target = $region12
    $region11: #{biased_mha_forward.5} parent=5 // pred_region
      %s127 = ssub.s32 %s9, 1
    $region12: #{biased_mha_forward.5} parent=5 // pred_fallthru
      _
    %p128 = scmp.lt.s32.totalorder %s9, 4
    // Predicated region
    $region13: #{biased_mha_forward.5} parent=5 // pred_check
      %p129 = pneg %p128
    $region14: #{biased_mha_forward.5} parent=5 // pred_check_branch
      %131 = sbr.rel (%p129) target = $region16
    $region15: #{biased_mha_forward.5} parent=5 // pred_region
      // Predicated region
      $region17: #{biased_mha_forward.5} parent=15 // pred_check
        %p132 = pneg %p29
      $region18: #{biased_mha_forward.5} parent=15 // pred_check_branch
        %134 = sbr.rel (%p132) target = $region20
      $region19: #{biased_mha_forward.5} parent=15 // pred_region
        %p135 = scmp.lt.s32.totalorder %s9, 3
        %s136 = scalar_select %p135, %s9, 3
        %s137 = smul.addr %s136, 8
        %s138 = scalar_lea.vmem %s0, %s137
      $region20: #{biased_mha_forward.5} parent=15 // pred_fallthru
        _
      // Predicated region
      $region21: #{biased_mha_forward.5} parent=15 // pred_check
        %p139 = pneg %p55
      $region22: #{biased_mha_forward.5} parent=15 // pred_check_branch
        %141 = sbr.rel (%p139) target = $region24
      $region23: #{biased_mha_forward.5} parent=15 // pred_region
        %p142 = scmp.lt.s32.totalorder %s9, 3
        %s143 = scalar_select %p142, %s9, 3
        %s144 = smul.addr %s143, 8
        %s145 = scalar_lea.vmem %s1, %s144
      $region24: #{biased_mha_forward.5} parent=15 // pred_fallthru
        _
      // Predicated region
      $region25: #{biased_mha_forward.5} parent=15 // pred_check
        %p146 = pneg %p81
      $region26: #{biased_mha_forward.5} parent=15 // pred_check_branch
        %148 = sbr.rel (%p146) target = $region28
      $region27: #{biased_mha_forward.5} parent=15 // pred_region
        %p149 = scmp.lt.s32.totalorder %s9, 3
        %s150 = scalar_select %p149, %s9, 3
        %s151 = smul.addr %s150, 8
        %s152 = scalar_lea.vmem %s2, %s151
      $region28: #{biased_mha_forward.5} parent=15 // pred_fallthru
        _
    $region16: #{biased_mha_forward.5} parent=5 // pred_fallthru
      _
    %p153 = scmp.le.s32.totalorder 1, %s9
    %p154 = scmp.lt.s32.totalorder %s9, 5
    %p155 = pnand %p153, %p154
    %p156 = pneg %p155
    // Predicated region
    $region29: #{biased_mha_forward.5} parent=5 // pred_check
      _
    $region30: #{biased_mha_forward.5} parent=5 // pred_check_branch
      %158 = sbr.rel (%p155) target = $region32
    $region31: #{biased_mha_forward.5} parent=5 // pred_region
      %s159 = ssub.s32 %s9, 1
      %p160 = scmp.lt.s32.totalorder %s14, 3
      %s161 = scalar_select %p160, %s14, 3
      %s162 = smul.addr %s161, 8
      %s163 = scalar_lea.vmem %s0, %s162
      %p164 = pneg %p35
      %p165 = pneg %p32
      %p166 = scmp.lt.s32.totalorder %s14, 3
      %s167 = scalar_select %p166, %s14, 3
      %s168 = smul.addr %s167, 8
      %s169 = scalar_lea.vmem %s1, %s168
      %p170 = pneg %p61
      %p171 = pneg %p58
      %p172 = scmp.lt.s32.totalorder %s14, 3
      %s173 = scalar_select %p172, %s14, 3
      %s174 = smul.addr %s173, 8
      %s175 = scalar_lea.vmem %s2, %s174
      %p176 = pneg %p87
      %p177 = pneg %p84
      %p178 = pneg %p113
      %p179 = pneg %p110
      %p180 = scmp.lt.s32.totalorder %s14, 3
      %s181 = scalar_select %p180, %s14, 3
      %s182 = smul.addr %s181, 8
      %s183 = scalar_lea.vmem %s3, %s182
      %p184 = scmp.lt.s32.totalorder %s14, 3
      %s185 = scalar_select %p184, %s14, 3
      %s186 = smul.addr %s185, 8
      %s187 = scalar_lea.vmem %s0, %s186
      %p188 = scmp.lt.s32.totalorder %s14, 3
      %s189 = scalar_select %p188, %s14, 3
      %s190 = smul.addr %s189, 8
      %s191 = scalar_lea.vmem %s1, %s190
      %p192 = scmp.lt.s32.totalorder %s14, 3
      %s193 = scalar_select %p192, %s14, 3
      %s194 = smul.addr %s193, 8
      %s195 = scalar_lea.vmem %s2, %s194
      %p196 = scmp.lt.s32.totalorder %s14, 3
      %s197 = scalar_select %p196, %s14, 3
      %s198 = smul.addr %s197, 8
      %s199 = scalar_lea.vmem %s3, %s198
      %v200 = vld [vmem:[%s187] sm:$0xff]
      %v201 = vmul.f32 %v200, 0.35355338
      %v202 = vld [vmem:[%s191] sm:$0xff]
      %vm203 = vcmask 64512
      %v205 = vsel %vm203, %v201, 0
      %207 = vmatprep.subr.mxu0 0.0
      %208 = vmatpush1.msra.mxu0 %v202
      %209 = vmatprep.subr.mxu0 0.0
      %210 = vmatpush1.msra.mxu0 0.0
      %211 = vmatprep.subr.mxu0 0.0
      %212 = vmatpush1.msra.mxu0 0.0
      %213 = vmatprep.subr.mxu0 0.0
      %214 = vmatpush1.msra.mxu0 0.0
      %215 = vmatprep.subr.mxu0 0.0
      %216 = vmatpush1.msra.mxu0 0.0
      %217 = vmatprep.subr.mxu0 0.0
      %218 = vmatpush1.msra.mxu0 0.0
      %219 = vmatprep.subr.mxu0 0.0
      %220 = vmatpush1.msra.mxu0 0.0
      %221 = vmatprep.subr.mxu0 0.0
      %222 = vmatpush1.msra.mxu0 0.0
      %223 = vmatprep.subr.mxu0 0.0
      %224 = vmatpush1.msra.mxu0 0.0
      %225 = vmatprep.subr.mxu0 0.0
      %226 = vmatpush1.msra.mxu0 0.0
      %227 = vmatprep.subr.mxu0 0.0
      %228 = vmatpush1.msra.mxu0 0.0
      %229 = vmatprep.subr.mxu0 0.0
      %230 = vmatpush1.msra.mxu0 0.0
      %231 = vmatprep.subr.mxu0 0.0
      %232 = vmatpush1.msra.mxu0 0.0
      %233 = vmatprep.subr.mxu0 0.0
      %234 = vmatpush1.msra.mxu0 0.0
      %235 = vmatprep.subr.mxu0 0.0
      %236 = vmatpush1.msra.mxu0 0.0
      %237 = vmatprep.subr.mxu0 0.0
      %238 = vmatpush1.msra.mxu0 0.0
      %239 = vmatprep.subr.mxu0 0.0
      %240 = vmatpush1.msra.mxu0 0.0
      %241 = vmatprep.subr.mxu0 0.0
      %242 = vmatpush1.msra.mxu0 0.0
      %243 = vmatprep.subr.mxu0 0.0
      %244 = vmatpush1.msra.mxu0 0.0
      %245 = vmatprep.subr.mxu0 0.0
      %246 = vmatpush1.msra.mxu0 0.0
      %247 = vmatprep.subr.mxu0 0.0
      %248 = vmatpush1.msra.mxu0 0.0
      %249 = vmatprep.subr.mxu0 0.0
      %250 = vmatpush1.msra.mxu0 0.0
      %251 = vmatprep.subr.mxu0 0.0
      %252 = vmatpush1.msra.mxu0 0.0
      %253 = vmatprep.subr.mxu0 0.0
      %254 = vmatpush1.msra.mxu0 0.0
      %255 = vmatprep.subr.mxu0 0.0
      %256 = vmatpush1.msra.mxu0 0.0
      %257 = vmatprep.subr.mxu0 0.0
      %258 = vmatpush1.msra.mxu0 0.0
      %259 = vmatprep.subr.mxu0 0.0
      %260 = vmatpush1.msra.mxu0 0.0
      %261 = vmatprep.subr.mxu0 0.0
      %262 = vmatpush1.msra.mxu0 0.0
      %263 = vmatprep.subr.mxu0 0.0
      %264 = vmatpush1.msra.mxu0 0.0
      %265 = vmatprep.subr.mxu0 0.0
      %266 = vmatpush1.msra.mxu0 0.0
      %267 = vmatprep.subr.mxu0 0.0
      %268 = vmatpush1.msra.mxu0 0.0
      %269 = vmatprep.subr.mxu0 0.0
      %270 = vmatpush1.msra.mxu0 0.0
      %271 = vmatprep.mubr.f32.mxu0 0.0
      %272 = vmatmul.mubr.f32.gmra.mrb[0].mxu0 %v205
      %v273 = vpop.f32.mrb[0].mxu0
      %v274 = vadd.f32 0.0, %v273
      %v275 = vpop.f32.mrb[0].mxu0
      %276 = vdwg.mxu0
      %v277 = vsel %vm203, %v274, -inf
      %278 = vmax.xlane.f32.xlu0 %v277
      %v279 = vpop.xlane.xlu0 %278
      %v280 = vsub.f32 %v274, %v279
      %v281 = vmul.f32 %v280, 1.442695
      %v282 = vpow.pop %v281
      %v283 = vsel %vm203, %v282, 0.0
      %284 = vadd.xlane.f32.xlu0 %v283
      %v285 = vpop.xlane.xlu0 %284
      %v286 = vrcp.pop %v285
      %v287 = vmul.f32 %v282, %v286
      %v288 = vld [vmem:[%s195] sm:$0xff]
      %v290 = vsel %vm203, %v287, 0
      %292 = vmatprep.subr.mxu0 0.0
      %293 = vmatpush1.msra.mxu0 %v288
      %294 = vmatprep.subr.mxu0 0.0
      %295 = vmatpush1.msra.mxu0 0.0
      %296 = vmatprep.subr.mxu0 0.0
      %297 = vmatpush1.msra.mxu0 0.0
      %298 = vmatprep.subr.mxu0 0.0
      %299 = vmatpush1.msra.mxu0 0.0
      %300 = vmatprep.subr.mxu0 0.0
      %301 = vmatpush1.msra.mxu0 0.0
      %302 = vmatprep.subr.mxu0 0.0
      %303 = vmatpush1.msra.mxu0 0.0
      %304 = vmatprep.subr.mxu0 0.0
      %305 = vmatpush1.msra.mxu0 0.0
      %306 = vmatprep.subr.mxu0 0.0
      %307 = vmatpush1.msra.mxu0 0.0
      %308 = vmatprep.subr.mxu0 0.0
      %309 = vmatpush1.msra.mxu0 0.0
      %310 = vmatprep.subr.mxu0 0.0
      %311 = vmatpush1.msra.mxu0 0.0
      %312 = vmatprep.subr.mxu0 0.0
      %313 = vmatpush1.msra.mxu0 0.0
      %314 = vmatprep.subr.mxu0 0.0
      %315 = vmatpush1.msra.mxu0 0.0
      %316 = vmatprep.subr.mxu0 0.0
      %317 = vmatpush1.msra.mxu0 0.0
      %318 = vmatprep.subr.mxu0 0.0
      %319 = vmatpush1.msra.mxu0 0.0
      %320 = vmatprep.subr.mxu0 0.0
      %321 = vmatpush1.msra.mxu0 0.0
      %322 = vmatprep.subr.mxu0 0.0
      %323 = vmatpush1.msra.mxu0 0.0
      %324 = vmatprep.subr.mxu0 0.0
      %325 = vmatpush1.msra.mxu0 0.0
      %326 = vmatprep.subr.mxu0 0.0
      %327 = vmatpush1.msra.mxu0 0.0
      %328 = vmatprep.subr.mxu0 0.0
      %329 = vmatpush1.msra.mxu0 0.0
      %330 = vmatprep.subr.mxu0 0.0
      %331 = vmatpush1.msra.mxu0 0.0
      %332 = vmatprep.subr.mxu0 0.0
      %333 = vmatpush1.msra.mxu0 0.0
      %334 = vmatprep.subr.mxu0 0.0
      %335 = vmatpush1.msra.mxu0 0.0
      %336 = vmatprep.subr.mxu0 0.0
      %337 = vmatpush1.msra.mxu0 0.0
      %338 = vmatprep.subr.mxu0 0.0
      %339 = vmatpush1.msra.mxu0 0.0
      %340 = vmatprep.subr.mxu0 0.0
      %341 = vmatpush1.msra.mxu0 0.0
      %342 = vmatprep.subr.mxu0 0.0
      %343 = vmatpush1.msra.mxu0 0.0
      %344 = vmatprep.subr.mxu0 0.0
      %345 = vmatpush1.msra.mxu0 0.0
      %346 = vmatprep.subr.mxu0 0.0
      %347 = vmatpush1.msra.mxu0 0.0
      %348 = vmatprep.subr.mxu0 0.0
      %349 = vmatpush1.msra.mxu0 0.0
      %350 = vmatprep.subr.mxu0 0.0
      %351 = vmatpush1.msra.mxu0 0.0
      %352 = vmatprep.subr.mxu0 0.0
      %353 = vmatpush1.msra.mxu0 0.0
      %354 = vmatprep.subr.mxu0 0.0
      %355 = vmatpush1.msra.mxu0 0.0
      %356 = vmatprep.mubr.f32.mxu0 0.0
      %357 = vmatmul.mubr.f32.gmra.mrb[0].mxu0 %v290
      %v358 = vpop.f32.mrb[0].mxu0
      %v359 = vadd.f32 0.0, %v358
      %v360 = vpop.f32.mrb[0].mxu0
      %361 = vdwg.mxu0
      %362 = vst.msk [vmem:[%s199] sm:$0xff] %vm203, %v359
      %p363 = scmp.lt.s32.totalorder %s14, 3
      %s364 = scalar_select %p363, %s14, 3
      %s365 = smul.addr %s364, 8
      %s366 = scalar_lea.vmem %s3, %s365
      // Predicated region
      $region33: #{biased_mha_forward.5} parent=31 // pred_check
        %p367 = pneg %p110
      $region34: #{biased_mha_forward.5} parent=31 // pred_check_branch
        %369 = sbr.rel (%p367) target = $region36
      $region35: #{biased_mha_forward.5} parent=31 // pred_region
        _
      $region36: #{biased_mha_forward.5} parent=31 // pred_fallthru
        _
    $region32: #{biased_mha_forward.5} parent=5 // pred_fallthru
      _
    %p370 = scmp.le.s32.totalorder 2, %s9
    // Predicated region
    $region37: #{biased_mha_forward.5} parent=5 // pred_check
      %p371 = pneg %p370
    $region38: #{biased_mha_forward.5} parent=5 // pred_check_branch
      %373 = sbr.rel (%p371) target = $region40
    $region39: #{biased_mha_forward.5} parent=5 // pred_region
      %s374 = ssub.s32 %s9, 2
      // Predicated region
      $region41: #{biased_mha_forward.5} parent=39 // pred_check
        %p375 = pneg %p116
      $region42: #{biased_mha_forward.5} parent=39 // pred_check_branch
        %377 = sbr.rel (%p375) target = $region44
      $region43: #{biased_mha_forward.5} parent=39 // pred_region
        %p378 = scmp.lt.s32.totalorder %s15, 3
        %s379 = scalar_select %p378, %s15, 3
        %s380 = smul.addr %s379, 8
        %s381 = scalar_lea.vmem %s3, %s380
      $region44: #{biased_mha_forward.5} parent=39 // pred_fallthru
        _
    $region40: #{biased_mha_forward.5} parent=5 // pred_fallthru
      _
  $region6: #{biased_mha_forward.5} parent=0 // loop_footer
    %s13 = sadd.s32 1, %s9
  $region7: #{biased_mha_forward.5} parent=0 // loop_footer_branch
    %8 = sbr.rel target = $region3
  $region8: #{biased_mha_forward.5} parent=0 // loop_exit
    _

// kernel: biased_mha_forward.6
$region0: #{biased_mha_forward.6}
  #allocation0 [shape = 'u32[]', space=smem, size = 0x4, offset = 0x4, fixed_abs, tag = 'smem constant byte address 0x4 - core index']
  #allocation1 [shape = 'u32[144,128]{1,0:T(1,128)}', space=vmem, size = 0x12000, scoped, tag = 'internal scratch']
  %s0 = inlined_call_operand.vmem [shape: f32[8,64], index: 0, kind: input, shape index: {}]
  %s1 = inlined_call_operand.vmem [shape: f32[64,32], index: 1, kind: input, shape index: {}]
  %s2 = inlined_call_operand.vmem [shape: f32[1,32], index: 2, kind: input, shape index: {}]
  %s3 = inlined_call_operand.vmem [shape: f32[32,32], index: 3, kind: input, shape index: {}]
  %s4 = inlined_call_operand.vmem [shape: f32[1,32], index: 4, kind: input, shape index: {}]
  %s5 = inlined_call_operand.vmem [shape: f32[8,32], index: 5, kind: output, shape index: {}]
  %s6 = sld [smem:[#allocation0]]
  $region30: #{biased_mha_forward.6} parent=0
    _
  %s8 = ssub.s32 1, %s6
  %s9 = scalar_select 0, %s8, %s6
  // Predicated region
  $region2: #{biased_mha_forward.6} parent=0 // pred_check
    _
  $region3: #{biased_mha_forward.6} parent=0 // pred_check_branch
    %11 = sbr.rel (0) target = $region5
  $region4: #{biased_mha_forward.6} parent=0 // pred_region
    _
  $region5: #{biased_mha_forward.6} parent=0 // pred_fallthru
    _
  // Predicated region
  $region6: #{biased_mha_forward.6} parent=0 // pred_check
    _
  $region7: #{biased_mha_forward.6} parent=0 // pred_check_branch
    %13 = sbr.rel (0) target = $region9
  $region8: #{biased_mha_forward.6} parent=0 // pred_region
    _
  $region9: #{biased_mha_forward.6} parent=0 // pred_fallthru
    _
  // Predicated region
  $region10: #{biased_mha_forward.6} parent=0 // pred_check
    _
  $region11: #{biased_mha_forward.6} parent=0 // pred_check_branch
    %15 = sbr.rel (0) target = $region13
  $region12: #{biased_mha_forward.6} parent=0 // pred_region
    _
  $region13: #{biased_mha_forward.6} parent=0 // pred_fallthru
    _
  // Predicated region
  $region14: #{biased_mha_forward.6} parent=0 // pred_check
    _
  $region15: #{biased_mha_forward.6} parent=0 // pred_check_branch
    %17 = sbr.rel (0) target = $region17
  $region16: #{biased_mha_forward.6} parent=0 // pred_region
    _
  $region17: #{biased_mha_forward.6} parent=0 // pred_fallthru
    _
  // Predicated region
  $region18: #{biased_mha_forward.6} parent=0 // pred_check
    _
  $region19: #{biased_mha_forward.6} parent=0 // pred_check_branch
    %19 = sbr.rel (0) target = $region21
  $region20: #{biased_mha_forward.6} parent=0 // pred_region
    _
  $region21: #{biased_mha_forward.6} parent=0 // pred_fallthru
    _
  %v20 = vld [vmem:[%s0] sm:$0xff]
  %v21 = vld [vmem:[%s1] sm:$0xff]
  %v22 = vld [vmem:[%s1 + $0x8] sm:$0xff]
  %v23 = vld [vmem:[%s1 + $0x10] sm:$0xff]
  %v24 = vld [vmem:[%s1 + $0x18] sm:$0xff]
  %v25 = vld [vmem:[%s1 + $0x20] sm:$0xff]
  %v26 = vld [vmem:[%s1 + $0x28] sm:$0xff]
  %v27 = vld [vmem:[%s1 + $0x30] sm:$0xff]
  %v28 = vld [vmem:[%s1 + $0x38] sm:$0xff]
  %v29 = vld [vmem:[%s2] sm:$0x1]
  %v31 = vlaneseq
  %v32 = vshrl.u32 %v31, 7
  %v33 = vsub.s32 0, %v32
  %v34 = vrot.slane %v29, %v33
  %vm36 = vcmask 523264
  %v38 = vsel %vm36, %v20, 0
  %40 = vmatprep.subr.mxu0 0.0
  %41 = vmatpush1.msra.mxu0 %v21
  %42 = vmatprep.subr.mxu0 0.0
  %43 = vmatpush1.msra.mxu0 %v22
  %44 = vmatprep.subr.mxu0 0.0
  %45 = vmatpush1.msra.mxu0 %v23
  %46 = vmatprep.subr.mxu0 0.0
  %47 = vmatpush1.msra.mxu0 %v24
  %48 = vmatprep.subr.mxu0 0.0
  %49 = vmatpush1.msra.mxu0 %v25
  %50 = vmatprep.subr.mxu0 0.0
  %51 = vmatpush1.msra.mxu0 %v26
  %52 = vmatprep.subr.mxu0 0.0
  %53 = vmatpush1.msra.mxu0 %v27
  %54 = vmatprep.subr.mxu0 0.0
  %55 = vmatpush1.msra.mxu0 %v28
  %56 = vmatprep.subr.mxu0 0.0
  %57 = vmatpush1.msra.mxu0 0.0
  %58 = vmatprep.subr.mxu0 0.0
  %59 = vmatpush1.msra.mxu0 0.0
  %60 = vmatprep.subr.mxu0 0.0
  %61 = vmatpush1.msra.mxu0 0.0
  %62 = vmatprep.subr.mxu0 0.0
  %63 = vmatpush1.msra.mxu0 0.0
  %64 = vmatprep.subr.mxu0 0.0
  %65 = vmatpush1.msra.mxu0 0.0
  %66 = vmatprep.subr.mxu0 0.0
  %67 = vmatpush1.msra.mxu0 0.0
  %68 = vmatprep.subr.mxu0 0.0
  %69 = vmatpush1.msra.mxu0 0.0
  %70 = vmatprep.subr.mxu0 0.0
  %71 = vmatpush1.msra.mxu0 0.0
  %72 = vmatprep.subr.mxu0 0.0
  %73 = vmatpush1.msra.mxu0 0.0
  %74 = vmatprep.subr.mxu0 0.0
  %75 = vmatpush1.msra.mxu0 0.0
  %76 = vmatprep.subr.mxu0 0.0
  %77 = vmatpush1.msra.mxu0 0.0
  %78 = vmatprep.subr.mxu0 0.0
  %79 = vmatpush1.msra.mxu0 0.0
  %80 = vmatprep.subr.mxu0 0.0
  %81 = vmatpush1.msra.mxu0 0.0
  %82 = vmatprep.subr.mxu0 0.0
  %83 = vmatpush1.msra.mxu0 0.0
  %84 = vmatprep.subr.mxu0 0.0
  %85 = vmatpush1.msra.mxu0 0.0
  %86 = vmatprep.subr.mxu0 0.0
  %87 = vmatpush1.msra.mxu0 0.0
  %88 = vmatprep.subr.mxu0 0.0
  %89 = vmatpush1.msra.mxu0 0.0
  %90 = vmatprep.subr.mxu0 0.0
  %91 = vmatpush1.msra.mxu0 0.0
  %92 = vmatprep.subr.mxu0 0.0
  %93 = vmatpush1.msra.mxu0 0.0
  %94 = vmatprep.subr.mxu0 0.0
  %95 = vmatpush1.msra.mxu0 0.0
  %96 = vmatprep.subr.mxu0 0.0
  %97 = vmatpush1.msra.mxu0 0.0
  %98 = vmatprep.subr.mxu0 0.0
  %99 = vmatpush1.msra.mxu0 0.0
  %100 = vmatprep.subr.mxu0 0.0
  %101 = vmatpush1.msra.mxu0 0.0
  %102 = vmatprep.subr.mxu0 0.0
  %103 = vmatpush1.msra.mxu0 0.0
  %104 = vmatprep.mubr.f32.mxu0 0.0
  %105 = vmatmul.mubr.f32.gmra.mrb[0].mxu0 %v38
  %v106 = vpop.f32.mrb[0].mxu0
  %v107 = vadd.f32 %v34, %v106
  %v108 = vpop.f32.mrb[0].mxu0
  %109 = vdwg.mxu0
  %v110 = vld [vmem:[%s3] sm:$0xff]
  %v111 = vld [vmem:[%s3 + $0x8] sm:$0xff]
  %v112 = vld [vmem:[%s3 + $0x10] sm:$0xff]
  %v113 = vld [vmem:[%s3 + $0x18] sm:$0xff]
  %v114 = vld [vmem:[%s4] sm:$0x1]
  %v116 = vlaneseq
  %v117 = vshrl.u32 %v116, 7
  %v118 = vsub.s32 0, %v117
  %v119 = vrot.slane %v114, %v118
  %vm121 = vcmask 261120
  %v123 = vsel %vm121, %v107, 0
  %125 = vmatprep.subr.mxu0 0.0
  %126 = vmatpush1.msra.mxu0 %v110
  %127 = vmatprep.subr.mxu0 0.0
  %128 = vmatpush1.msra.mxu0 %v111
  %129 = vmatprep.subr.mxu0 0.0
  %130 = vmatpush1.msra.mxu0 %v112
  %131 = vmatprep.subr.mxu0 0.0
  %132 = vmatpush1.msra.mxu0 %v113
  %133 = vmatprep.subr.mxu0 0.0
  %134 = vmatpush1.msra.mxu0 0.0
  %135 = vmatprep.subr.mxu0 0.0
  %136 = vmatpush1.msra.mxu0 0.0
  %137 = vmatprep.subr.mxu0 0.0
  %138 = vmatpush1.msra.mxu0 0.0
  %139 = vmatprep.subr.mxu0 0.0
  %140 = vmatpush1.msra.mxu0 0.0
  %141 = vmatprep.subr.mxu0 0.0
  %142 = vmatpush1.msra.mxu0 0.0
  %143 = vmatprep.subr.mxu0 0.0
  %144 = vmatpush1.msra.mxu0 0.0
  %145 = vmatprep.subr.mxu0 0.0
  %146 = vmatpush1.msra.mxu0 0.0
  %147 = vmatprep.subr.mxu0 0.0
  %148 = vmatpush1.msra.mxu0 0.0
  %149 = vmatprep.subr.mxu0 0.0
  %150 = vmatpush1.msra.mxu0 0.0
  %151 = vmatprep.subr.mxu0 0.0
  %152 = vmatpush1.msra.mxu0 0.0
  %153 = vmatprep.subr.mxu0 0.0
  %154 = vmatpush1.msra.mxu0 0.0
  %155 = vmatprep.subr.mxu0 0.0
  %156 = vmatpush1.msra.mxu0 0.0
  %157 = vmatprep.subr.mxu0 0.0
  %158 = vmatpush1.msra.mxu0 0.0
  %159 = vmatprep.subr.mxu0 0.0
  %160 = vmatpush1.msra.mxu0 0.0
  %161 = vmatprep.subr.mxu0 0.0
  %162 = vmatpush1.msra.mxu0 0.0
  %163 = vmatprep.subr.mxu0 0.0
  %164 = vmatpush1.msra.mxu0 0.0
  %165 = vmatprep.subr.mxu0 0.0
  %166 = vmatpush1.msra.mxu0 0.0
  %167 = vmatprep.subr.mxu0 0.0
  %168 = vmatpush1.msra.mxu0 0.0
  %169 = vmatprep.subr.mxu0 0.0
  %170 = vmatpush1.msra.mxu0 0.0
  %171 = vmatprep.subr.mxu0 0.0
  %172 = vmatpush1.msra.mxu0 0.0
  %173 = vmatprep.subr.mxu0 0.0
  %174 = vmatpush1.msra.mxu0 0.0
  %175 = vmatprep.subr.mxu0 0.0
  %176 = vmatpush1.msra.mxu0 0.0
  %177 = vmatprep.subr.mxu0 0.0
  %178 = vmatpush1.msra.mxu0 0.0
  %179 = vmatprep.subr.mxu0 0.0
  %180 = vmatpush1.msra.mxu0 0.0
  %181 = vmatprep.subr.mxu0 0.0
  %182 = vmatpush1.msra.mxu0 0.0
  %183 = vmatprep.subr.mxu0 0.0
  %184 = vmatpush1.msra.mxu0 0.0
  %185 = vmatprep.subr.mxu0 0.0
  %186 = vmatpush1.msra.mxu0 0.0
  %187 = vmatprep.subr.mxu0 0.0
  %188 = vmatpush1.msra.mxu0 0.0
  %189 = vmatprep.mubr.f32.mxu0 0.0
  %190 = vmatmul.mubr.f32.gmra.mrb[0].mxu0 %v123
  %v191 = vpop.f32.mrb[0].mxu0
  %v192 = vadd.f32 %v119, %v191
  %v193 = vpop.f32.mrb[0].mxu0
  %194 = vdwg.mxu0
  %v195 = vsub.f32 0.0, %v192
  %v196 = vmul.f32 %v195, 1.442695
  %v197 = vpow.pop %v196
  %v198 = vadd.f32 %v197, 1.0
  %v199 = vrcp.pop %v198
  %v200 = vmul.f32 %v107, %v199
  %201 = vst.msk [vmem:[%s5] sm:$0xff] %vm121, %v200
  // Predicated region
  $region22: #{biased_mha_forward.6} parent=0 // pred_check
    _
  $region23: #{biased_mha_forward.6} parent=0 // pred_check_branch
    %203 = sbr.rel (0) target = $region25
  $region24: #{biased_mha_forward.6} parent=0 // pred_region
    _
  $region25: #{biased_mha_forward.6} parent=0 // pred_fallthru
    _
  // Predicated region
  $region26: #{biased_mha_forward.6} parent=0 // pred_check
    _
  $region27: #{biased_mha_forward.6} parent=0 // pred_check_branch
    %205 = sbr.rel (0) target = $region29
  $region28: #{biased_mha_forward.6} parent=0 // pred_region
    _
  $region29: #{biased_mha_forward.6} parent=0 // pred_fallthru
    _

// kernel: biased_mha_forward.7
$region0: #{biased_mha_forward.7}
  #allocation0 [shape = 'u32[]', space=smem, size = 0x4, offset = 0x4, fixed_abs, tag = 'smem constant byte address 0x4 - core index']
  #allocation1 [shape = 'u32[144,128]{1,0:T(1,128)}', space=vmem, size = 0x12000, scoped, tag = 'internal scratch']
  %s0 = inlined_call_operand.vmem [shape: f32[8,32], index: 0, kind: input, shape index: {}]
  %s1 = inlined_call_operand.vmem [shape: f32[32,32], index: 1, kind: input, shape index: {}]
  %s2 = inlined_call_operand.vmem [shape: f32[1,32], index: 2, kind: input, shape index: {}]
  %s3 = inlined_call_operand.vmem [shape: f32[8,32], index: 3, kind: input, shape index: {}]
  %s4 = inlined_call_operand.hbm [shape: f32[8,32], index: 4, kind: output, shape index: {}]
  %s5 = sld [smem:[#allocation0]]
  $region26: #{biased_mha_forward.7} parent=0
    _
  %s7 = ssub.s32 1, %s5
  %s8 = scalar_select 0, %s7, %s5
  $region1: #{biased_mha_forward.7} parent=0
    #allocation2 [shape = 'u8[4096]{0}', space=vmem, size = 0x1000, scoped, tag = 'output window, operand 0, single buffered']
    #allocation3 [shape = 's32[1]{0}', space=sflag, size = 0x4, scoped, tag = 'scoped memory for biased_mha_forward.7']
    %9 = vsyncpa [#allocation3], 0
    // Predicated region
    $region2: #{biased_mha_forward.7} parent=1 // pred_check
      _
    $region3: #{biased_mha_forward.7} parent=1 // pred_check_branch
      %11 = sbr.rel (0) target = $region5
    $region4: #{biased_mha_forward.7} parent=1 // pred_region
      _
    $region5: #{biased_mha_forward.7} parent=1 // pred_fallthru
      _
    // Predicated region
    $region6: #{biased_mha_forward.7} parent=1 // pred_check
      _
    $region7: #{biased_mha_forward.7} parent=1 // pred_check_branch
      %13 = sbr.rel (0) target = $region9
    $region8: #{biased_mha_forward.7} parent=1 // pred_region
      _
    $region9: #{biased_mha_forward.7} parent=1 // pred_fallthru
      _
    // Predicated region
    $region10: #{biased_mha_forward.7} parent=1 // pred_check
      _
    $region11: #{biased_mha_forward.7} parent=1 // pred_check_branch
      %15 = sbr.rel (0) target = $region13
    $region12: #{biased_mha_forward.7} parent=1 // pred_region
      _
    $region13: #{biased_mha_forward.7} parent=1 // pred_fallthru
      _
    // Predicated region
    $region14: #{biased_mha_forward.7} parent=1 // pred_check
      _
    $region15: #{biased_mha_forward.7} parent=1 // pred_check_branch
      %17 = sbr.rel (0) target = $region17
    $region16: #{biased_mha_forward.7} parent=1 // pred_region
      _
    $region17: #{biased_mha_forward.7} parent=1 // pred_fallthru
      _
    %v18 = vld [vmem:[%s0] sm:$0xff]
    %v19 = vld [vmem:[%s1] sm:$0xff]
    %v20 = vld [vmem:[%s1 + $0x8] sm:$0xff]
    %v21 = vld [vmem:[%s1 + $0x10] sm:$0xff]
    %v22 = vld [vmem:[%s1 + $0x18] sm:$0xff]
    %v23 = vld [vmem:[%s2] sm:$0x1]
    %v25 = vlaneseq
    %v26 = vshrl.u32 %v25, 7
    %v27 = vsub.s32 0, %v26
    %v28 = vrot.slane %v23, %v27
    %vm30 = vcmask 261120
    %v32 = vsel %vm30, %v18, 0
    %34 = vmatprep.subr.mxu0 0.0
    %35 = vmatpush1.msra.mxu0 %v19
    %36 = vmatprep.subr.mxu0 0.0
    %37 = vmatpush1.msra.mxu0 %v20
    %38 = vmatprep.subr.mxu0 0.0
    %39 = vmatpush1.msra.mxu0 %v21
    %40 = vmatprep.subr.mxu0 0.0
    %41 = vmatpush1.msra.mxu0 %v22
    %42 = vmatprep.subr.mxu0 0.0
    %43 = vmatpush1.msra.mxu0 0.0
    %44 = vmatprep.subr.mxu0 0.0
    %45 = vmatpush1.msra.mxu0 0.0
    %46 = vmatprep.subr.mxu0 0.0
    %47 = vmatpush1.msra.mxu0 0.0
    %48 = vmatprep.subr.mxu0 0.0
    %49 = vmatpush1.msra.mxu0 0.0
    %50 = vmatprep.subr.mxu0 0.0
    %51 = vmatpush1.msra.mxu0 0.0
    %52 = vmatprep.subr.mxu0 0.0
    %53 = vmatpush1.msra.mxu0 0.0
    %54 = vmatprep.subr.mxu0 0.0
    %55 = vmatpush1.msra.mxu0 0.0
    %56 = vmatprep.subr.mxu0 0.0
    %57 = vmatpush1.msra.mxu0 0.0
    %58 = vmatprep.subr.mxu0 0.0
    %59 = vmatpush1.msra.mxu0 0.0
    %60 = vmatprep.subr.mxu0 0.0
    %61 = vmatpush1.msra.mxu0 0.0
    %62 = vmatprep.subr.mxu0 0.0
    %63 = vmatpush1.msra.mxu0 0.0
    %64 = vmatprep.subr.mxu0 0.0
    %65 = vmatpush1.msra.mxu0 0.0
    %66 = vmatprep.subr.mxu0 0.0
    %67 = vmatpush1.msra.mxu0 0.0
    %68 = vmatprep.subr.mxu0 0.0
    %69 = vmatpush1.msra.mxu0 0.0
    %70 = vmatprep.subr.mxu0 0.0
    %71 = vmatpush1.msra.mxu0 0.0
    %72 = vmatprep.subr.mxu0 0.0
    %73 = vmatpush1.msra.mxu0 0.0
    %74 = vmatprep.subr.mxu0 0.0
    %75 = vmatpush1.msra.mxu0 0.0
    %76 = vmatprep.subr.mxu0 0.0
    %77 = vmatpush1.msra.mxu0 0.0
    %78 = vmatprep.subr.mxu0 0.0
    %79 = vmatpush1.msra.mxu0 0.0
    %80 = vmatprep.subr.mxu0 0.0
    %81 = vmatpush1.msra.mxu0 0.0
    %82 = vmatprep.subr.mxu0 0.0
    %83 = vmatpush1.msra.mxu0 0.0
    %84 = vmatprep.subr.mxu0 0.0
    %85 = vmatpush1.msra.mxu0 0.0
    %86 = vmatprep.subr.mxu0 0.0
    %87 = vmatpush1.msra.mxu0 0.0
    %88 = vmatprep.subr.mxu0 0.0
    %89 = vmatpush1.msra.mxu0 0.0
    %90 = vmatprep.subr.mxu0 0.0
    %91 = vmatpush1.msra.mxu0 0.0
    %92 = vmatprep.subr.mxu0 0.0
    %93 = vmatpush1.msra.mxu0 0.0
    %94 = vmatprep.subr.mxu0 0.0
    %95 = vmatpush1.msra.mxu0 0.0
    %96 = vmatprep.subr.mxu0 0.0
    %97 = vmatpush1.msra.mxu0 0.0
    %98 = vmatprep.mubr.f32.mxu0 0.0
    %99 = vmatmul.mubr.f32.gmra.mrb[0].mxu0 %v32
    %v100 = vpop.f32.mrb[0].mxu0
    %v101 = vadd.f32 %v28, %v100
    %v102 = vpop.f32.mrb[0].mxu0
    %103 = vdwg.mxu0
    %v104 = vld [vmem:[%s3] sm:$0xff]
    %v105 = vadd.f32 %v101, %v104
    %106 = vst.msk [vmem:[#allocation2] sm:$0xff] %vm30, %v105
    // Predicated region
    $region18: #{biased_mha_forward.7} parent=1 // pred_check
      _
    $region19: #{biased_mha_forward.7} parent=1 // pred_check_branch
      %108 = sbr.rel (0) target = $region21
    $region20: #{biased_mha_forward.7} parent=1 // pred_region
      %s110 = ssub.s32 128, 128
      %111 = vsyncadd [#allocation3], %s110
      %s113 = sshll.u32 [#allocation2], 4
      %s114 = int_to_ptr.vmem [resolvable:$true] %s113
      %116 = dma.vmem_to_hbm [thread:$0]  %s114, 128, %s4, [#allocation3]
    $region21: #{biased_mha_forward.7} parent=1 // pred_fallthru
      _
    // Predicated region
    $region22: #{biased_mha_forward.7} parent=1 // pred_check
      _
    $region23: #{biased_mha_forward.7} parent=1 // pred_check_branch
      %118 = sbr.rel (0) target = $region25
    $region24: #{biased_mha_forward.7} parent=1 // pred_region
      %119 = dma.done [#allocation3], 128
    $region25: #{biased_mha_forward.7} parent=1 // pred_fallthru
      _
    %120 = vsyncpa [#allocation3], 1

</llo_original>
